<compile_context>
chip_gen: v5e
topology: v5e:2x2
jax: 0.10.0
libtpu: 0.0.40
codegen_flags: <defaults>
</compile_context>

<pallas_src>
import functools

import jax
import jax.numpy as jnp
from jax import lax
from jax.experimental import pallas as pl
from jax.experimental.pallas import tpu as pltpu

KSIZE = 3
PAD = 1
BN_EPS = 1e-5


def _conv_tile(x, w_ref, L, mm_dtype):
    """3-tap Conv1d (no bias) on one zero-padded NLC tile -> (tn, L, C_out) f32.

    x:     (tn, Lp, C_in)  zero-padded input tile (channels-last)
    w_ref: (KSIZE, C_in, C_out)
    """
    tn, _, c_in = x.shape
    c_out = w_ref.shape[2]
    # Flattened MXU shape (M = tn*L) is layout-clean only when L is a sublane
    # multiple; otherwise fall back to the (proven) batched einsum.
    flat = (L % 8 == 0)
    acc = None
    for k in range(KSIZE):
        xk = x[:, k:k + L, :].astype(mm_dtype)
        wk = w_ref[k].astype(mm_dtype)                       # (C_in, C_out)
        if flat:
            p = jnp.dot(xk.reshape(tn * L, c_in), wk,
                        preferred_element_type=jnp.float32)
        else:
            p = jnp.einsum("nlc,co->nlo", xk, wk,
                           preferred_element_type=jnp.float32)
        acc = p if acc is None else acc + p
    if flat:
        acc = acc.reshape(tn, L, c_out)
    return acc                                               # (tn, L, C_out) f32


def conv_stats_kernel(x_ref, w_ref, stats_ref, *, L, mm_dtype):
    # Stats-only pass: per-channel [sum, sum-of-squares] of the (bias-free) conv.
    # stats_ref block: (1, 2, C_out), grid-resident over the inner ("arbitrary")
    # grid axis; one block per stats slice (leading "parallel" axis).
    y = _conv_tile(x_ref[...], w_ref, L, mm_dtype)           # (tn, L, C_out)
    c_out = y.shape[2]
    s = jnp.sum(y, axis=(0, 1), keepdims=True).reshape(1, c_out)
    ss = jnp.sum(y * y, axis=(0, 1), keepdims=True).reshape(1, c_out)
    upd = jnp.concatenate([s, ss], axis=0).reshape(1, 2, c_out)  # single stacked store

    @pl.when(pl.program_id(1) == 0)
    def _init():
        stats_ref[...] = jnp.zeros_like(stats_ref)

    stats_ref[...] += upd


def conv_bn_relu_kernel(x_ref, w_ref, stats_ref, gamma_ref, beta_ref, o_ref, *,
                        L, inv_count, mm_dtype):
    # Recompute the conv (cheaper than round-tripping it through HBM), then apply
    # BN folded into per-channel scale/shift, ReLU, and a fused NLC->NCL transpose
    # so the store is lane-dense (L on the lane axis).
    y = _conv_tile(x_ref[...], w_ref, L, mm_dtype)           # (tn, L, C_out) f32

    tot = jnp.sum(stats_ref[...], axis=0)                    # (2, C_out): sum slices
    mean = tot[0:1, :] * inv_count                           # (1, C_out)
    var = tot[1:2, :] * inv_count - mean * mean
    scale = gamma_ref[...] * lax.rsqrt(var + BN_EPS)         # (1, C_out)
    shift = beta_ref[...] - mean * scale                     # (1, C_out)

    out = jnp.maximum(y * scale[None, :, :] + shift[None, :, :], 0.0)
    o_ref[...] = jnp.transpose(out, (0, 2, 1)).astype(o_ref.dtype)


def _vmem_budget_bytes():
    # Generation-aware scoped-VMEM budget: ~3/4 of physical, capped at 96 MiB.
    # v7x (64 MiB physical) -> ~48 MiB; v5e/v6e (128 MiB) -> 96 MiB.
    try:
        cap = int(pltpu.get_tpu_info().vmem_capacity_bytes)
    except Exception:
        cap = 64 << 20                                       # conservative (v7x)
    return int(min((cap // 4) * 3, 96 << 20))


def conv_block_forward(x_ncl, w_oik, b, gamma, beta, *, tn=None,
                       n_stats_slices=2, matmul_dtype=jnp.float32):
    """x_ncl: (N, C_in, L) float32 (PyTorch NCL). Returns (N, C_out, L).

    `b` (conv bias) is accepted for signature parity but not applied: training-mode
    BN subtracts the batch mean right after the conv, so it cancels exactly.
    `matmul_dtype=jnp.bfloat16` halves MXU/VMEM cost for production channel counts
    (kept f32 here for bit-level parity with the f32 reference).
    """
    del b  # exact cancellation under training-mode BN
    N, C_in, L = x_ncl.shape
    C_out = w_oik.shape[0]

    # Glue: NCL -> NLC, zero-pad length (rounded to a sublane multiple of 8).
    Lp = ((L + 2 * PAD + 7) // 8) * 8
    x_nlc = jnp.transpose(x_ncl, (0, 2, 1))
    x_pad = jnp.pad(x_nlc, ((0, 0), (PAD, Lp - L - PAD), (0, 0)))
    w_kio = jnp.transpose(w_oik, (2, 1, 0))                  # (KSIZE, C_in, C_out)
    g2 = gamma.reshape(1, C_out).astype(jnp.float32)
    be2 = beta.reshape(1, C_out).astype(jnp.float32)

    # Tile sizing against the *double-buffered* footprint + in-kernel temporaries,
    # leaving 25% headroom under the explicit vmem limit.
    budget = _vmem_budget_bytes()
    per_row = 4 * (2 * Lp * C_in            # x block, double-buffered
                   + 2 * L * C_out          # out block, double-buffered (phase 2)
                   + KSIZE * L * (C_in + C_out))  # tap slices / f32 accumulators
    if tn is None:
        tn = max(1, ((budget * 3) // 4) // max(per_row, 1))
    tn = int(max(1, min(int(tn), N)))

    n_slices = int(max(1, n_stats_slices))
    if tn * n_slices > N:                   # not enough rows to keep >1 slice busy
        n_slices = 1
    steps = int(pl.cdiv(N, tn * n_slices))
    N_pad = steps * tn * n_slices
    if N_pad != N:
        # Zero rows contribute exactly 0 to sum / sum-of-squares (bias dropped),
        # so BN statistics stay exact; padded output rows are sliced off below.
        x_pad = jnp.pad(x_pad, ((0, N_pad - N), (0, 0), (0, 0)))

    inv_count = 1.0 / float(N * L)

    # ---- Phase 1: per-channel sum / sum-of-squares of the conv (stats only) ----
    stats = pl.pallas_call(
        functools.partial(conv_stats_kernel, L=L, mm_dtype=matmul_dtype),
        out_shape=jax.ShapeDtypeStruct((n_slices, 2, C_out), jnp.float32),
        grid=(n_slices, steps),
        in_specs=[
            pl.BlockSpec((tn, Lp, C_in), lambda s, i: (s * steps + i, 0, 0)),
            pl.BlockSpec((KSIZE, C_in, C_out), lambda s, i: (0, 0, 0)),
        ],
        out_specs=pl.BlockSpec((1, 2, C_out), lambda s, i: (s, 0, 0)),
        compiler_params=pltpu.CompilerParams(
            dimension_semantics=("parallel", "arbitrary"),
            vmem_limit_bytes=budget),
    )(x_pad, w_kio)

    # ---- Phase 2: recompute conv + fused BN scale/shift + ReLU + NCL store ------
    out_ncl = pl.pallas_call(
        functools.partial(conv_bn_relu_kernel, L=L, inv_count=inv_count,
                          mm_dtype=matmul_dtype),
        out_shape=jax.ShapeDtypeStruct((N_pad, C_out, L), jnp.float32),
        grid=(N_pad // tn,),
        in_specs=[
            pl.BlockSpec((tn, Lp, C_in), lambda i: (i, 0, 0)),
            pl.BlockSpec((KSIZE, C_in, C_out), lambda i: (0, 0, 0)),
            pl.BlockSpec((n_slices, 2, C_out), lambda i: (0, 0, 0)),
            pl.BlockSpec((1, C_out), lambda i: (0, 0)),
            pl.BlockSpec((1, C_out), lambda i: (0, 0)),
        ],
        out_specs=pl.BlockSpec((tn, C_out, L), lambda i: (i, 0, 0)),
        compiler_params=pltpu.CompilerParams(
            dimension_semantics=("parallel",),     # megacore-shardable
            vmem_limit_bytes=budget),
    )(x_pad, w_kio, stats, g2, be2)

    return out_ncl if N_pad == N else out_ncl[:N]


def reference_forward(x_ncl, w_oik, b, gamma, beta):
    """Pure-JAX reference (conv + bias + training-mode BN + ReLU), NCL layout."""
    y = lax.conv_general_dilated(
        x_ncl, w_oik, window_strides=(1,), padding=[(PAD, PAD)],
        dimension_numbers=("NCH", "OIH", "NCH"),
    ) + b[None, :, None]
    mean = jnp.mean(y, axis=(0, 2), keepdims=True)
    var = jnp.mean((y - mean) ** 2, axis=(0, 2), keepdims=True)
    y = (y - mean) * lax.rsqrt(var + BN_EPS)
    y = y * gamma[None, :, None] + beta[None, :, None]
    return jnp.maximum(y, 0.0)


if __name__ == "__main__":
    # Small shapes consistent with conv_block(ch_in=4, ch_out=8) on a 1-D signal.
    N, C_in, C_out, L = 2, 4, 8, 16

    key = jax.random.PRNGKey(0)
    kx, kw, kb = jax.random.split(key, 3)

    x = jax.random.normal(kx, (N, C_in, L), dtype=jnp.float32)

    fan_in = C_in * KSIZE
    bound = float(fan_in) ** -0.5
    w = jax.random.uniform(kw, (C_out, C_in, KSIZE), jnp.float32, -bound, bound)
    b = jax.random.uniform(kb, (C_out,), jnp.float32, -bound, bound)
    gamma = jnp.ones((C_out,), jnp.float32)   # BatchNorm1d default weight
    beta = jnp.zeros((C_out,), jnp.float32)   # BatchNorm1d default bias

    ref = reference_forward(x, w, b, gamma, beta)

    # Default path: auto tile size (single grid step at this toy batch).
    out = jax.block_until_ready(conv_block_forward(x, w, b, gamma, beta))
    assert out.shape == (N, C_out, L)
    assert jnp.allclose(out, ref, rtol=1e-3, atol=1e-5), "mismatch (auto tn)"

    # tn=1 -> two parallel stats slices, exercising the per-slice accumulation
    # and cross-slice reduction path.
    out2 = jax.block_until_ready(conv_block_forward(x, w, b, gamma, beta, tn=1))
    assert jnp.allclose(out2, ref, rtol=1e-3, atol=1e-5), "mismatch (tn=1)"

    # Non-dividing batch: N=3 with tn=2 pads to 4 rows, exercising multi-step
    # stats accumulation and the zero-row padding invariance.
    x3 = jnp.concatenate([x, 0.5 * x[:1]], axis=0)
    ref3 = reference_forward(x3, w, b, gamma, beta)
    out3 = jax.block_until_ready(conv_block_forward(x3, w, b, gamma, beta, tn=2))
    assert jnp.allclose(out3, ref3, rtol=1e-3, atol=1e-5), "mismatch (padded N)"

    print("KERNEL_OK")
</pallas_src>

<mosaic_0001>
module attributes {stable_mosaic.version = 11 : i64} {
  func.func @conv_stats_kernel(%arg0: i32, %arg1: i32, %arg2: memref<2x24x4xf32, #tpu.memory_space<vmem>>, %arg3: memref<3x4x8xf32, #tpu.memory_space<vmem>>, %arg4: memref<1x2x8xf32, #tpu.memory_space<vmem>>) attributes {dimension_semantics = [#tpu.dimension_semantics<parallel>, #tpu.dimension_semantics<arbitrary>], iteration_bounds = array<i64: 1, 1>, scalar_prefetch = 0 : i64, scratch_operands = 0 : i64, tpu.core_type = #tpu.core_type<tc>, window_params = [{transform_indices = @transform_0, window_bounds = array<i64: 2, 24, 4>}, {pipeline_mode = #tpu.pipeline_mode<synchronous>, transform_indices = @transform_1, window_bounds = array<i64: 3, 4, 8>}, {transform_indices = @transform_2, window_bounds = array<i64: 1, 2, 8>}]} {
    %c0 = arith.constant 0 : index
    %c0_0 = arith.constant 0 : index
    %c0_1 = arith.constant 0 : index
    %0 = vector.load %arg2[%c0, %c0_0, %c0_1] : memref<2x24x4xf32, #tpu.memory_space<vmem>>, vector<2x24x4xf32>
    %1 = vector.extract_strided_slice %0 {offsets = [0, 0, 0], sizes = [2, 16, 4], strides = [1, 1, 1]} : vector<2x24x4xf32> to vector<2x16x4xf32>
    %c0_2 = arith.constant 0 : index
    %c0_3 = arith.constant 0 : index
    %c0_4 = arith.constant 0 : index
    %2 = vector.load %arg3[%c0_2, %c0_3, %c0_4] : memref<3x4x8xf32, #tpu.memory_space<vmem>>, vector<1x4x8xf32>
    %3 = vector.shape_cast %2 : vector<1x4x8xf32> to vector<4x8xf32>
    %4 = vector.shape_cast %1 : vector<2x16x4xf32> to vector<32x4xf32>
    %cst = arith.constant dense<0.000000e+00> : vector<32x8xf32>
    %5 = tpu.matmul %4, %3, %cst {dimension_numbers = #tpu.dot_dimension_numbers<[1], [0], [0], [1], [0, 0, 1, 1], [], []>} : vector<32x4xf32>, vector<4x8xf32>, vector<32x8xf32> -> vector<32x8xf32>
    %6 = vector.extract_strided_slice %0 {offsets = [0, 1, 0], sizes = [2, 16, 4], strides = [1, 1, 1]} : vector<2x24x4xf32> to vector<2x16x4xf32>
    %c1 = arith.constant 1 : index
    %c0_5 = arith.constant 0 : index
    %c0_6 = arith.constant 0 : index
    %7 = vector.load %arg3[%c1, %c0_5, %c0_6] : memref<3x4x8xf32, #tpu.memory_space<vmem>>, vector<1x4x8xf32>
    %8 = vector.shape_cast %7 : vector<1x4x8xf32> to vector<4x8xf32>
    %9 = vector.shape_cast %6 : vector<2x16x4xf32> to vector<32x4xf32>
    %cst_7 = arith.constant dense<0.000000e+00> : vector<32x8xf32>
    %10 = tpu.matmul %9, %8, %cst_7 {dimension_numbers = #tpu.dot_dimension_numbers<[1], [0], [0], [1], [0, 0, 1, 1], [], []>} : vector<32x4xf32>, vector<4x8xf32>, vector<32x8xf32> -> vector<32x8xf32>
    %11 = arith.addf %5, %10 : vector<32x8xf32>
    %12 = vector.extract_strided_slice %0 {offsets = [0, 2, 0], sizes = [2, 16, 4], strides = [1, 1, 1]} : vector<2x24x4xf32> to vector<2x16x4xf32>
    %c2 = arith.constant 2 : index
    %c0_8 = arith.constant 0 : index
    %c0_9 = arith.constant 0 : index
    %13 = vector.load %arg3[%c2, %c0_8, %c0_9] : memref<3x4x8xf32, #tpu.memory_space<vmem>>, vector<1x4x8xf32>
    %14 = vector.shape_cast %13 : vector<1x4x8xf32> to vector<4x8xf32>
    %15 = vector.shape_cast %12 : vector<2x16x4xf32> to vector<32x4xf32>
    %cst_10 = arith.constant dense<0.000000e+00> : vector<32x8xf32>
    %16 = tpu.matmul %15, %14, %cst_10 {dimension_numbers = #tpu.dot_dimension_numbers<[1], [0], [0], [1], [0, 0, 1, 1], [], []>} : vector<32x4xf32>, vector<4x8xf32>, vector<32x8xf32> -> vector<32x8xf32>
    %17 = arith.addf %11, %16 : vector<32x8xf32>
    %18 = vector.shape_cast %17 : vector<32x8xf32> to vector<2x16x8xf32>
    %cst_11 = arith.constant dense<0.000000e+00> : vector<8xf32>
    %19 = vector.multi_reduction <add>, %18, %cst_11 [0, 1] : vector<2x16x8xf32> to vector<8xf32>
    %20 = vector.shape_cast %19 : vector<8xf32> to vector<1x1x8xf32>
    %21 = vector.shape_cast %20 : vector<1x1x8xf32> to vector<1x8xf32>
    %22 = arith.mulf %18, %18 : vector<2x16x8xf32>
    %cst_12 = arith.constant dense<0.000000e+00> : vector<8xf32>
    %23 = vector.multi_reduction <add>, %22, %cst_12 [0, 1] : vector<2x16x8xf32> to vector<8xf32>
    %24 = vector.shape_cast %23 : vector<8xf32> to vector<1x1x8xf32>
    %25 = vector.shape_cast %24 : vector<1x1x8xf32> to vector<1x8xf32>
    %26 = tpu.concatenate %21, %25 in 0 : vector<1x8xf32>, vector<1x8xf32> -> vector<2x8xf32>
    %27 = vector.shape_cast %26 : vector<2x8xf32> to vector<1x2x8xf32>
    %c0_i32 = arith.constant 0 : i32
    %28 = arith.cmpi eq, %arg1, %c0_i32 : i32
    %29 = arith.extui %28 : i1 to i32
    %c0_i32_13 = arith.constant 0 : i32
    %30 = arith.cmpi ne, %29, %c0_i32_13 : i32
    scf.if %30 {
      %cst_20 = arith.constant 0.000000e+00 : f32
      %34 = vector.broadcast %cst_20 : f32 to vector<1x2x8xf32>
      %c0_21 = arith.constant 0 : index
      %c0_22 = arith.constant 0 : index
      %c0_23 = arith.constant 0 : index
      %35 = vector.load %arg4[%c0_21, %c0_22, %c0_23] : memref<1x2x8xf32, #tpu.memory_space<vmem>>, vector<1x2x8xf32>
      tpu.vector_store %arg4[%c0_21, %c0_22, %c0_23], %34 {strides = array<i32>} : memref<1x2x8xf32, #tpu.memory_space<vmem>>, vector<1x2x8xf32>,
    } else {
    }
    %c0_14 = arith.constant 0 : index
    %c0_15 = arith.constant 0 : index
    %c0_16 = arith.constant 0 : index
    %31 = vector.load %arg4[%c0_14, %c0_15, %c0_16] : memref<1x2x8xf32, #tpu.memory_space<vmem>>, vector<1x2x8xf32>
    %32 = arith.addf %31, %27 : vector<1x2x8xf32>
    %c0_17 = arith.constant 0 : index
    %c0_18 = arith.constant 0 : index
    %c0_19 = arith.constant 0 : index
    %33 = vector.load %arg4[%c0_17, %c0_18, %c0_19] : memref<1x2x8xf32, #tpu.memory_space<vmem>>, vector<1x2x8xf32>
    tpu.vector_store %arg4[%c0_17, %c0_18, %c0_19], %32 {strides = array<i32>} : memref<1x2x8xf32, #tpu.memory_space<vmem>>, vector<1x2x8xf32>,
    return
  }
  func.func @transform_0(%arg0: i32, %arg1: i32) -> (i32, i32, i32) {
    %c1_i32 = arith.constant 1 : i32
    %0 = arith.muli %arg0, %c1_i32 : i32
    %1 = arith.addi %0, %arg1 : i32
    %c0_i32 = arith.constant 0 : i32
    %c0_i32_0 = arith.constant 0 : i32
    %c0_i32_1 = arith.constant 0 : i32
    return %1, %c0_i32, %c0_i32_0 : i32, i32, i32
  }
  func.func @transform_1(%arg0: i32, %arg1: i32) -> (i32, i32, i32) {
    %c0_i32 = arith.constant 0 : i32
    %c0_i32_0 = arith.constant 0 : i32
    %c0_i32_1 = arith.constant 0 : i32
    %c0_i32_2 = arith.constant 0 : i32
    return %c0_i32, %c0_i32_0, %c0_i32_1 : i32, i32, i32
  }
  func.func @transform_2(%arg0: i32, %arg1: i32) -> (i32, i32, i32) {
    %c0_i32 = arith.constant 0 : i32
    %c0_i32_0 = arith.constant 0 : i32
    %c0_i32_1 = arith.constant 0 : i32
    return %arg0, %c0_i32, %c0_i32_0 : i32, i32, i32
  }
}

</mosaic_0001>

<llo_original>
// kernel: tpu_custom_call.1
$region0: #{tpu_custom_call.1}
  #allocation0 [shape = 'u32[]', space=smem, size = 0x4, offset = 0x4, fixed_abs, tag = 'smem constant byte address 0x4 - core index']
  #allocation1 [shape = 'u32[72,128]{1,0:T(1,128)}', space=vmem, size = 0x9000, scoped, tag = 'internal scratch']
  %s0 = inlined_call_operand.vmem [shape: f32[2,24,4], index: 0, kind: input, shape index: {}]
  %s1 = inlined_call_operand.vmem [shape: f32[3,4,8], index: 1, kind: input, shape index: {}]
  %s2 = inlined_call_operand.hbm [shape: f32[1,2,8], index: 2, kind: output, shape index: {}]
  %s3 = sld [smem:[#allocation0]]
  $region22: #{tpu_custom_call.1} parent=0
    _
  %s5 = ssub.s32 1, %s3
  %s6 = scalar_select 0, %s5, %s3
  $region1: #{tpu_custom_call.1} parent=0
    #allocation2 [shape = 'u8[1024]{0}', space=vmem, size = 0x400, scoped, tag = 'output window, operand 0, single buffered']
    #allocation3 [shape = 's32[1]{0}', space=sflag, size = 0x4, scoped, tag = 'scoped memory for tpu_custom_call.1']
    %7 = vsyncpa [#allocation3], 0
    // Predicated region
    $region2: #{tpu_custom_call.1} parent=1 // pred_check
      _
    $region3: #{tpu_custom_call.1} parent=1 // pred_check_branch
      %9 = sbr.rel (0) target = $region5
    $region4: #{tpu_custom_call.1} parent=1 // pred_region
      %s10 = sadd.s32 0, 0
      %s11 = smul.u32 2, %s10
      %p12 = scmp.lt.s32.totalorder %s11, 1
      %s13 = scalar_select %p12, %s11, 1
      %s14 = smul.addr %s13, 3
      %s15 = smul.addr %s14, 8
      %s16 = scalar_lea.vmem %s0, %s15
      %s17 = sadd.s32 0, 0
      %s18 = smul.u32 2, %s17
    $region5: #{tpu_custom_call.1} parent=1 // pred_fallthru
      _
    // Predicated region
    $region6: #{tpu_custom_call.1} parent=1 // pred_check
      _
    $region7: #{tpu_custom_call.1} parent=1 // pred_check_branch
      %20 = sbr.rel (0) target = $region9
    $region8: #{tpu_custom_call.1} parent=1 // pred_region
      _
    $region9: #{tpu_custom_call.1} parent=1 // pred_fallthru
      _
    %s21 = sadd.s32 0, 0
    %s22 = smul.u32 2, %s21
    %p23 = scmp.lt.s32.totalorder %s22, 1
    %s24 = scalar_select %p23, %s22, 1
    %s25 = smul.addr %s24, 3
    %s26 = smul.addr %s25, 8
    %s27 = scalar_lea.vmem %s0, %s26
    %s28 = sadd.s32 0, 0
    %s29 = smul.u32 2, %s28
    %p30 = scmp.lt.s32.totalorder %s29, 1
    %s31 = scalar_select %p30, %s29, 1
    %s32 = smul.addr %s31, 3
    %s33 = smul.addr %s32, 8
    %s34 = scalar_lea.vmem %s0, %s33
    %s35 = sadd.s32 0, 0
    %s36 = smul.u32 2, %s35
    %v37 = vld [vmem:[%s34] sm:$0xff]
    %v38 = vld [vmem:[%s34 + $0x8] sm:$0xff]
    %v39 = vld [vmem:[%s34 + $0x10] sm:$0xff]
    %v40 = vld [vmem:[%s34 + $0x18] sm:$0xff]
    %v41 = vld [vmem:[%s34 + $0x20] sm:$0xff]
    %v42 = vld [vmem:[%s34 + $0x28] sm:$0xff]
    %v43 = vld [vmem:[%s1] sm:$0xf]
    %s44 = scalar_lea.vmem %s1, 4
    %v45 = vld [vmem:[%s44] sm:$0xf]
    %vm52 = vcmask 1046528
    %v53 = vrot.slane %v37, 1
    %v54 = vrot.slane %v38, 1
    %v55 = vsel %vm52, %v53, %v54
    %v56 = vrot.slane %v39, 1
    %v57 = vsel %vm52, %v54, %v56
    %v58 = vrot.slane %v40, 1
    %v59 = vrot.slane %v41, 1
    %v60 = vsel %vm52, %v58, %v59
    %v61 = vrot.slane %v42, 1
    %v62 = vsel %vm52, %v59, %v61
    %vm63 = vcmask 31744
    %v64 = vsel %vm63, %v55, 0
    %v66 = vsel %vm63, %v57, 0
    %v68 = vsel %vm63, %v60, 0
    %v70 = vsel %vm63, %v62, 0
    %vm72 = vcmask 1043456
    %v74 = vsel %vm72, %v45, 0
    %76 = vmatpush.msra.mxu0 0.0
    %77 = vmatpush.msra.mxu0 0.0
    %78 = vmatpush.msra.mxu0 0.0
    %79 = vmatpush.msra.mxu0 0.0
    %80 = vmatpush.msra.mxu0 0.0
    %81 = vmatpush.msra.mxu0 0.0
    %82 = vmatpush.msra.mxu0 0.0
    %83 = vmatpush.msra.mxu0 0.0
    %84 = vmatpush.msra.mxu0 0.0
    %85 = vmatpush.msra.mxu0 0.0
    %86 = vmatpush.msra.mxu0 0.0
    %87 = vmatpush.msra.mxu0 0.0
    %88 = vmatpush.msra.mxu0 0.0
    %89 = vmatpush.msra.mxu0 0.0
    %90 = vmatpush.msra.mxu0 0.0
    %91 = vmatpush.msra.mxu0 %v74
    %92 = vmatmul.f32.gmra.mxu0 %v64
    %v93 = vpop.f32.mrf.mxu0
    %v94 = vadd.f32 0.0, %v93
    %95 = vmatmul.f32.gmra.mxu0 %v66
    %v96 = vpop.f32.mrf.mxu0
    %v97 = vadd.f32 0.0, %v96
    %98 = vmatmul.f32.gmra.mxu0 %v68
    %v99 = vpop.f32.mrf.mxu0
    %v100 = vadd.f32 0.0, %v99
    %101 = vmatmul.f32.gmra.mxu0 %v70
    %v102 = vpop.f32.mrf.mxu0
    %v103 = vadd.f32 0.0, %v102
    %104 = vdwg.mxu0
    %v105 = vsel %vm63, %v37, 0
    %v107 = vsel %vm63, %v38, 0
    %v109 = vsel %vm63, %v40, 0
    %v111 = vsel %vm63, %v41, 0
    %v114 = vsel %vm72, %v43, 0
    %116 = vmatpush.msra.mxu0 0.0
    %117 = vmatpush.msra.mxu0 0.0
    %118 = vmatpush.msra.mxu0 0.0
    %119 = vmatpush.msra.mxu0 0.0
    %120 = vmatpush.msra.mxu0 0.0
    %121 = vmatpush.msra.mxu0 0.0
    %122 = vmatpush.msra.mxu0 0.0
    %123 = vmatpush.msra.mxu0 0.0
    %124 = vmatpush.msra.mxu0 0.0
    %125 = vmatpush.msra.mxu0 0.0
    %126 = vmatpush.msra.mxu0 0.0
    %127 = vmatpush.msra.mxu0 0.0
    %128 = vmatpush.msra.mxu0 0.0
    %129 = vmatpush.msra.mxu0 0.0
    %130 = vmatpush.msra.mxu0 0.0
    %131 = vmatpush.msra.mxu0 %v114
    %132 = vmatmul.f32.gmra.mxu0 %v105
    %v133 = vpop.f32.mrf.mxu0
    %v134 = vadd.f32 %v94, %v133
    %135 = vmatmul.f32.gmra.mxu0 %v107
    %v136 = vpop.f32.mrf.mxu0
    %v137 = vadd.f32 %v97, %v136
    %138 = vmatmul.f32.gmra.mxu0 %v109
    %v139 = vpop.f32.mrf.mxu0
    %v140 = vadd.f32 %v100, %v139
    %141 = vmatmul.f32.gmra.mxu0 %v111
    %v142 = vpop.f32.mrf.mxu0
    %v143 = vadd.f32 %v103, %v142
    %144 = vdwg.mxu0
    %s145 = scalar_lea.vmem %s1, 8
    %v146 = vld [vmem:[%s145] sm:$0xf]
    %vm147 = vcmask 1045504
    %v148 = vrot.slane %v37, 2
    %v149 = vrot.slane %v38, 2
    %v150 = vsel %vm147, %v148, %v149
    %v151 = vrot.slane %v39, 2
    %v152 = vsel %vm147, %v149, %v151
    %v153 = vrot.slane %v40, 2
    %v154 = vrot.slane %v41, 2
    %v155 = vsel %vm147, %v153, %v154
    %v156 = vrot.slane %v42, 2
    %v157 = vsel %vm147, %v154, %v156
    %v158 = vsel %vm63, %v150, 0
    %v160 = vsel %vm63, %v152, 0
    %v162 = vsel %vm63, %v155, 0
    %v164 = vsel %vm63, %v157, 0
    %v167 = vsel %vm72, %v146, 0
    %169 = vmatpush.msra.mxu0 0.0
    %170 = vmatpush.msra.mxu0 0.0
    %171 = vmatpush.msra.mxu0 0.0
    %172 = vmatpush.msra.mxu0 0.0
    %173 = vmatpush.msra.mxu0 0.0
    %174 = vmatpush.msra.mxu0 0.0
    %175 = vmatpush.msra.mxu0 0.0
    %176 = vmatpush.msra.mxu0 0.0
    %177 = vmatpush.msra.mxu0 0.0
    %178 = vmatpush.msra.mxu0 0.0
    %179 = vmatpush.msra.mxu0 0.0
    %180 = vmatpush.msra.mxu0 0.0
    %181 = vmatpush.msra.mxu0 0.0
    %182 = vmatpush.msra.mxu0 0.0
    %183 = vmatpush.msra.mxu0 0.0
    %184 = vmatpush.msra.mxu0 %v167
    %185 = vmatmul.f32.gmra.mxu0 %v158
    %v186 = vpop.f32.mrf.mxu0
    %v187 = vadd.f32 0.0, %v186
    %188 = vmatmul.f32.gmra.mxu0 %v160
    %v189 = vpop.f32.mrf.mxu0
    %v190 = vadd.f32 0.0, %v189
    %191 = vmatmul.f32.gmra.mxu0 %v162
    %v192 = vpop.f32.mrf.mxu0
    %v193 = vadd.f32 0.0, %v192
    %194 = vmatmul.f32.gmra.mxu0 %v164
    %v195 = vpop.f32.mrf.mxu0
    %v196 = vadd.f32 0.0, %v195
    %197 = vdwg.mxu0
    %v198 = vadd.f32 %v134, %v187
    %v199 = vadd.f32 %v137, %v190
    %v200 = vadd.f32 %v140, %v193
    %v201 = vadd.f32 %v143, %v196
    %vm202 = vcmask 64512
    %v203 = vsel %vm202, %v198, 0.0
    %v204 = vsel %vm202, %v199, 0.0
    %v205 = vadd.f32 %v203, %v204
    %v206 = vsel %vm202, %v200, 0.0
    %v207 = vadd.f32 %v205, %v206
    %v208 = vsel %vm202, %v201, 0.0
    %v209 = vadd.f32 %v207, %v208
    %v210 = vrot.slane %v209, 4
    %v211 = vadd.f32 %v209, %v210
    %v212 = vrot.slane %v211, 2
    %v213 = vadd.f32 %v211, %v212
    %v214 = vrot.slane %v213, 1
    %v215 = vadd.f32 %v213, %v214
    %v216 = vmul.f32 %v198, %v198
    %v217 = vmul.f32 %v199, %v199
    %v218 = vmul.f32 %v200, %v200
    %v219 = vmul.f32 %v201, %v201
    %v220 = vsel %vm202, %v216, 0.0
    %v221 = vsel %vm202, %v217, 0.0
    %v222 = vadd.f32 %v220, %v221
    %v223 = vsel %vm202, %v218, 0.0
    %v224 = vadd.f32 %v222, %v223
    %v225 = vsel %vm202, %v219, 0.0
    %v226 = vadd.f32 %v224, %v225
    %v227 = vrot.slane %v226, 4
    %v228 = vadd.f32 %v226, %v227
    %v229 = vrot.slane %v228, 2
    %v230 = vadd.f32 %v228, %v229
    %v231 = vrot.slane %v230, 1
    %v232 = vadd.f32 %v230, %v231
    %vm233 = vcmask 1040384
    %v234 = vsel %vm233, %v215, %v232
    %p235 = scmp.eq.s32.totalorder 0, 0
    // Predicated region
    $region10: #{tpu_custom_call.1} parent=1 // pred_check
      %p236 = pneg %p235
    $region11: #{tpu_custom_call.1} parent=1 // pred_check_branch
      %238 = sbr.rel (%p236) target = $region13
    $region12: #{tpu_custom_call.1} parent=1 // pred_region
      %vm239 = vcmask 58368
      %240 = vst.msk [vmem:[#allocation2] sm:$0x3] %vm239, 0.0
    $region13: #{tpu_custom_call.1} parent=1 // pred_fallthru
      _
    %v241 = vld [vmem:[#allocation2] sm:$0x3]
    %v242 = vadd.f32 %v241, %v234
    %vm243 = vcmask 58368
    %244 = vst.msk [vmem:[#allocation2] sm:$0x3] %vm243, %v242
    // Predicated region
    $region14: #{tpu_custom_call.1} parent=1 // pred_check
      _
    $region15: #{tpu_custom_call.1} parent=1 // pred_check_branch
      %246 = sbr.rel (0) target = $region17
    $region16: #{tpu_custom_call.1} parent=1 // pred_region
      %248 = vsyncadd [#allocation3], 0
      %s250 = sshll.u32 [#allocation2], 4
      %s251 = int_to_ptr.vmem [resolvable:$true] %s250
      %s252 = sshll.u32 %s2, 4
      %s253 = int_to_ptr.hbm [resolvable:$true] %s252
      %255 = dma.vmem_to_hbm [thread:$0]  %s251, 32, %s253, [#allocation3]
    $region17: #{tpu_custom_call.1} parent=1 // pred_fallthru
      _
    // Predicated region
    $region18: #{tpu_custom_call.1} parent=1 // pred_check
      _
    $region19: #{tpu_custom_call.1} parent=1 // pred_check_branch
      %257 = sbr.rel (0) target = $region21
    $region20: #{tpu_custom_call.1} parent=1 // pred_region
      %259 = dma.done [#allocation3], 32
    $region21: #{tpu_custom_call.1} parent=1 // pred_fallthru
      _
    %260 = vsyncpa [#allocation3], 1

</llo_original>
